<compile_context>
chip_gen: v5e
topology: v5e:2x2
jax: 0.10.0
libtpu: 0.0.40
codegen_flags: <defaults>
</compile_context>

<pallas_src>
import math

import jax
import jax.numpy as jnp
from jax.experimental import pallas as pl
from jax.experimental.pallas import tpu as pltpu


_INV_SQRT2 = 0.7071067811865476
# Abramowitz & Stegun 7.1.26 erf approximation, |error| <= 1.5e-7 on [0, inf).
_AS_P = 0.3275911
_AS_A1 = 0.254829592
_AS_A2 = -0.284496736
_AS_A3 = 1.421413741
_AS_A4 = -1.453152027
_AS_A5 = 1.061405429


def _gelu_exact(x):
    # torch.nn.functional.gelu default (erf-based).  Used only by the reference.
    return 0.5 * x * (1.0 + jax.lax.erf(x * _INV_SQRT2))


def _gelu_eup(x):
    # GELU(x) = 0.5*x*(1 + erf(x/sqrt(2))) with erf via A&S 7.1.26: the only
    # transcendental is a single exp (lowers to the EUP slot); the VALU only
    # sees a handful of mul/adds.  erf error <= 1.5e-7, comfortably inside the
    # 1e-5 tolerance against the exact erf GELU.
    z = jnp.abs(x) * _INV_SQRT2
    t = 1.0 / (1.0 + _AS_P * z)
    poly = t * (_AS_A1 + t * (_AS_A2 + t * (_AS_A3 + t * (_AS_A4 + t * _AS_A5))))
    erf_abs = 1.0 - poly * jnp.exp(-(z * z))
    erf = jnp.where(x >= 0.0, erf_abs, -erf_abs)
    return 0.5 * x * (1.0 + erf)


def ffn_kernel(x_ref, w1_ref, b1_ref, w2_ref, b2_ref, w3_ref, b3_ref, o_ref):
    # x_ref: (1, TB) batch-on-lanes tile; weights are "hidden on sublanes".
    x = x_ref[...]                                                    # (1, TB)

    # Layer 1 (in_features=1): K=1 matmul on the MXU; bias + GELU on VPU/EUP.
    h = jnp.dot(w1_ref[...], x, preferred_element_type=jnp.float32)  # (H, TB)
    h = _gelu_eup(h + b1_ref[...])

    # Layer 2: the HxH contraction on the MXU.  h2^T = W2 @ h1^T.
    h = jnp.dot(w2_ref[...], h, preferred_element_type=jnp.float32)  # (H, TB)
    h = _gelu_eup(h + b2_ref[...])

    # Layer 3 (out_features=1): (1,H)@(H,TB) on the MXU; bias on the VPU.
    o = jnp.dot(w3_ref[...], h, preferred_element_type=jnp.float32)  # (1, TB)
    o_ref[...] = (o + b3_ref[...]).astype(o_ref.dtype)


def _round_up(a, b):
    return (a + b - 1) // b * b


def feed_forward_network(x, params, *, tile_b=1024):
    """x: (N, 1) float32.  params: dict from init_params (hidden-on-sublanes)."""
    w1, b1, w2, b2, w3, b3 = (params["w1"], params["b1"], params["w2"],
                              params["b2"], params["w3"], params["b3"])
    N = x.shape[0]
    H = w1.shape[0]

    # Lane-dense batch layout.  Cap the tile so the batch grid has at least two
    # steps whenever N allows it (so the "parallel" axis shards across the two
    # TensorCores on v7x); tiles stay multiples of 128 lanes.
    max_tile = _round_up(pl.cdiv(N, 2), 128) if N > 128 else 128
    tile_b = _round_up(max(128, min(tile_b, max_tile)), 128)
    n_pad = _round_up(N, tile_b)
    x_lanes = jnp.pad(x.reshape(-1), (0, n_pad - N)).reshape(1, n_pad)

    grid = (n_pad // tile_b,)

    def resident(arr):
        # Weights/biases: constant block index -> stay VMEM-resident across steps.
        # TODO(synk): for H >~ 512 single-buffer these and K-tile w2 with an
        # "arbitrary" reduction axis so the footprint fits v7x's 64 MiB VMEM.
        return pl.BlockSpec(arr.shape, lambda i: (0, 0))

    # VMEM budget from the actual footprint (double-buffered weights + streamed
    # x/out tiles + generous headroom for fused intermediates), capped at the
    # 32 MiB that fits every TPU generation's physical VMEM.
    weight_bytes = 4 * (H * H + 4 * H + 1)
    io_bytes = 2 * 2 * (tile_b * 4)
    interm_bytes = 8 * H * tile_b * 4
    vmem_limit = int(min(32 * 1024 * 1024,
                         max(8 * 1024 * 1024,
                             2 * (2 * weight_bytes + io_bytes + interm_bytes))))

    # Advisory cost hint for the XLA scheduler.
    flops = 2 * n_pad * H * (H + 2)
    transcendentals = 2 * n_pad * H          # one exp per GELU evaluation
    bytes_accessed = 4 * (2 * n_pad + H * H + 4 * H + 1)

    out = pl.pallas_call(
        ffn_kernel,
        out_shape=jax.ShapeDtypeStruct((1, n_pad), jnp.float32),
        grid=grid,
        in_specs=[
            pl.BlockSpec((1, tile_b), lambda i: (0, i)),   # x: streamed batch tiles
            resident(w1), resident(b1),
            resident(w2), resident(b2),
            resident(w3), resident(b3),
        ],
        out_specs=pl.BlockSpec((1, tile_b), lambda i: (0, i)),
        compiler_params=pltpu.CompilerParams(
            dimension_semantics=("parallel",),     # megacore/2-TC sharding on v7x
            vmem_limit_bytes=vmem_limit,
        ),
        cost_estimate=pl.CostEstimate(
            flops=flops,
            transcendentals=transcendentals,
            bytes_accessed=bytes_accessed,
        ),
    )(x_lanes, w1, b1, w2, b2, w3, b3)

    return out.reshape(-1)[:N].reshape(N, 1)


def init_params(key, hidden_size):
    # Deterministic init mimicking torch.nn.Linear's U(-1/sqrt(fan_in), 1/sqrt(fan_in)),
    # stored in the kernel's "hidden on sublanes, batch on lanes" layout:
    #   w1, b1: (H, 1)   (l1.weight (H,1), l1.bias)
    #   w2:     (H, H)   (l2.weight as-is: [out, in]; kernel uses h2^T = W2 @ h1^T)
    #   b2:     (H, 1)
    #   w3:     (1, H)   (l3.weight as-is: (1,H))
    #   b3:     (1, 1)
    ks = jax.random.split(key, 6)
    H = hidden_size

    def u(k, shape, fan_in):
        bound = 1.0 / math.sqrt(fan_in)
        return jax.random.uniform(k, shape, jnp.float32, -bound, bound)

    return {
        "w1": u(ks[0], (H, 1), 1), "b1": u(ks[1], (H, 1), 1),
        "w2": u(ks[2], (H, H), H), "b2": u(ks[3], (H, 1), H),
        "w3": u(ks[4], (1, H), H), "b3": u(ks[5], (1, 1), H),
    }


if __name__ == "__main__":
    key = jax.random.PRNGKey(0)
    k_x, k_p = jax.random.split(key)

    hidden_size = 32   # H is a multiple of 8 (sublane-aligned)
    N = 8
    x = jax.random.normal(k_x, (N, 1), dtype=jnp.float32)
    params = init_params(k_p, hidden_size)

    out = feed_forward_network(x, params)
    out = jax.block_until_ready(out)

    # Pure-JAX reference of the same math (standard batch-on-rows formulation,
    # exact erf GELU == torch default).
    def ref(x, p):
        h = _gelu_exact(x @ p["w1"].T + p["b1"].T)     # (N,1)@(1,H)+(1,H)
        h = _gelu_exact(h @ p["w2"].T + p["b2"].T)     # (N,H)@(H,H)+(1,H)
        return h @ p["w3"].T + p["b3"]                 # (N,H)@(H,1)+(1,1)

    expected = ref(x, params)
    assert out.shape == (N, 1)
    assert jnp.allclose(out, expected, atol=1e-5, rtol=1e-5)

    print("KERNEL_OK")
</pallas_src>

<mosaic_0001>
module attributes {stable_mosaic.version = 11 : i64} {
  func.func @ffn_kernel(%arg0: i32, %arg1: memref<1x128xf32, #tpu.memory_space<vmem>>, %arg2: memref<32x1xf32, #tpu.memory_space<vmem>>, %arg3: memref<32x1xf32, #tpu.memory_space<vmem>>, %arg4: memref<32x32xf32, #tpu.memory_space<vmem>>, %arg5: memref<32x1xf32, #tpu.memory_space<vmem>>, %arg6: memref<1x32xf32, #tpu.memory_space<vmem>>, %arg7: memref<1x1xf32, #tpu.memory_space<vmem>>, %arg8: memref<1x128xf32, #tpu.memory_space<vmem>>) attributes {dimension_semantics = [#tpu.dimension_semantics<parallel>], iteration_bounds = array<i64: 1>, scalar_prefetch = 0 : i64, scratch_operands = 0 : i64, tpu.core_type = #tpu.core_type<tc>, window_params = [{transform_indices = @transform_0, window_bounds = array<i64: 1, 128>}, {pipeline_mode = #tpu.pipeline_mode<synchronous>, transform_indices = @transform_1, window_bounds = array<i64: 32, 1>}, {pipeline_mode = #tpu.pipeline_mode<synchronous>, transform_indices = @transform_2, window_bounds = array<i64: 32, 1>}, {pipeline_mode = #tpu.pipeline_mode<synchronous>, transform_indices = @transform_3, window_bounds = array<i64: 32, 32>}, {pipeline_mode = #tpu.pipeline_mode<synchronous>, transform_indices = @transform_4, window_bounds = array<i64: 32, 1>}, {pipeline_mode = #tpu.pipeline_mode<synchronous>, transform_indices = @transform_5, window_bounds = array<i64: 1, 32>}, {pipeline_mode = #tpu.pipeline_mode<synchronous>, transform_indices = @transform_6, window_bounds = array<i64: 1, 1>}, {transform_indices = @transform_7, window_bounds = array<i64: 1, 128>}]} {
    %c0 = arith.constant 0 : index
    %c0_0 = arith.constant 0 : index
    %0 = vector.load %arg1[%c0, %c0_0] : memref<1x128xf32, #tpu.memory_space<vmem>>, vector<1x128xf32>
    %c0_1 = arith.constant 0 : index
    %c0_2 = arith.constant 0 : index
    %1 = vector.load %arg2[%c0_1, %c0_2] : memref<32x1xf32, #tpu.memory_space<vmem>>, vector<32x1xf32>
    %cst = arith.constant dense<0.000000e+00> : vector<32x128xf32>
    %2 = tpu.matmul %1, %0, %cst {dimension_numbers = #tpu.dot_dimension_numbers<[1], [0], [0], [1], [0, 0, 1, 1], [], []>} : vector<32x1xf32>, vector<1x128xf32>, vector<32x128xf32> -> vector<32x128xf32>
    %c0_3 = arith.constant 0 : index
    %c0_4 = arith.constant 0 : index
    %3 = vector.load %arg3[%c0_3, %c0_4] : memref<32x1xf32, #tpu.memory_space<vmem>>, vector<32x1xf32>
    %4 = vector.broadcast %3 : vector<32x1xf32> to vector<32x128xf32>
    %5 = arith.addf %2, %4 : vector<32x128xf32>
    %6 = math.absf %5 : vector<32x128xf32>
    %cst_5 = arith.constant 0.707106769 : f32
    %7 = vector.broadcast %cst_5 : f32 to vector<32x128xf32>
    %8 = arith.mulf %6, %7 : vector<32x128xf32>
    %cst_6 = arith.constant 0.327591091 : f32
    %9 = vector.broadcast %cst_6 : f32 to vector<32x128xf32>
    %10 = arith.mulf %9, %8 : vector<32x128xf32>
    %cst_7 = arith.constant 1.000000e+00 : f32
    %11 = vector.broadcast %cst_7 : f32 to vector<32x128xf32>
    %12 = arith.addf %11, %10 : vector<32x128xf32>
    %cst_8 = arith.constant 1.000000e+00 : f32
    %13 = vector.broadcast %cst_8 : f32 to vector<32x128xf32>
    %14 = arith.divf %13, %12 : vector<32x128xf32>
    %cst_9 = arith.constant 1.06140542 : f32
    %15 = vector.broadcast %cst_9 : f32 to vector<32x128xf32>
    %16 = arith.mulf %14, %15 : vector<32x128xf32>
    %cst_10 = arith.constant -1.45315206 : f32
    %17 = vector.broadcast %cst_10 : f32 to vector<32x128xf32>
    %18 = arith.addf %17, %16 : vector<32x128xf32>
    %19 = arith.mulf %14, %18 : vector<32x128xf32>
    %cst_11 = arith.constant 1.42141378 : f32
    %20 = vector.broadcast %cst_11 : f32 to vector<32x128xf32>
    %21 = arith.addf %20, %19 : vector<32x128xf32>
    %22 = arith.mulf %14, %21 : vector<32x128xf32>
    %cst_12 = arith.constant -0.284496725 : f32
    %23 = vector.broadcast %cst_12 : f32 to vector<32x128xf32>
    %24 = arith.addf %23, %22 : vector<32x128xf32>
    %25 = arith.mulf %14, %24 : vector<32x128xf32>
    %cst_13 = arith.constant 0.254829586 : f32
    %26 = vector.broadcast %cst_13 : f32 to vector<32x128xf32>
    %27 = arith.addf %26, %25 : vector<32x128xf32>
    %28 = arith.mulf %14, %27 : vector<32x128xf32>
    %29 = arith.mulf %8, %8 : vector<32x128xf32>
    %cst_14 = arith.constant 0.000000e+00 : f32
    %30 = vector.broadcast %cst_14 : f32 to vector<32x128xf32>
    %31 = arith.subf %30, %29 : vector<32x128xf32>
    %32 = math.exp %31 : vector<32x128xf32>
    %33 = arith.mulf %28, %32 : vector<32x128xf32>
    %cst_15 = arith.constant 1.000000e+00 : f32
    %34 = vector.broadcast %cst_15 : f32 to vector<32x128xf32>
    %35 = arith.subf %34, %33 : vector<32x128xf32>
    %cst_16 = arith.constant 0.000000e+00 : f32
    %36 = vector.broadcast %cst_16 : f32 to vector<32x128xf32>
    %37 = arith.cmpf oge, %5, %36 : vector<32x128xf32>
    %cst_17 = arith.constant 0.000000e+00 : f32
    %38 = vector.broadcast %cst_17 : f32 to vector<32x128xf32>
    %39 = arith.subf %38, %35 : vector<32x128xf32>
    %40 = arith.select %37, %35, %39 : vector<32x128xi1>, vector<32x128xf32>
    %cst_18 = arith.constant 5.000000e-01 : f32
    %41 = vector.broadcast %cst_18 : f32 to vector<32x128xf32>
    %42 = arith.mulf %41, %5 : vector<32x128xf32>
    %cst_19 = arith.constant 1.000000e+00 : f32
    %43 = vector.broadcast %cst_19 : f32 to vector<32x128xf32>
    %44 = arith.addf %43, %40 : vector<32x128xf32>
    %45 = arith.mulf %42, %44 : vector<32x128xf32>
    %c0_20 = arith.constant 0 : index
    %c0_21 = arith.constant 0 : index
    %46 = vector.load %arg4[%c0_20, %c0_21] : memref<32x32xf32, #tpu.memory_space<vmem>>, vector<32x32xf32>
    %cst_22 = arith.constant dense<0.000000e+00> : vector<32x128xf32>
    %47 = tpu.matmul %46, %45, %cst_22 {dimension_numbers = #tpu.dot_dimension_numbers<[1], [0], [0], [1], [0, 0, 1, 1], [], []>} : vector<32x32xf32>, vector<32x128xf32>, vector<32x128xf32> -> vector<32x128xf32>
    %c0_23 = arith.constant 0 : index
    %c0_24 = arith.constant 0 : index
    %48 = vector.load %arg5[%c0_23, %c0_24] : memref<32x1xf32, #tpu.memory_space<vmem>>, vector<32x1xf32>
    %49 = vector.broadcast %48 : vector<32x1xf32> to vector<32x128xf32>
    %50 = arith.addf %47, %49 : vector<32x128xf32>
    %51 = math.absf %50 : vector<32x128xf32>
    %cst_25 = arith.constant 0.707106769 : f32
    %52 = vector.broadcast %cst_25 : f32 to vector<32x128xf32>
    %53 = arith.mulf %51, %52 : vector<32x128xf32>
    %cst_26 = arith.constant 0.327591091 : f32
    %54 = vector.broadcast %cst_26 : f32 to vector<32x128xf32>
    %55 = arith.mulf %54, %53 : vector<32x128xf32>
    %cst_27 = arith.constant 1.000000e+00 : f32
    %56 = vector.broadcast %cst_27 : f32 to vector<32x128xf32>
    %57 = arith.addf %56, %55 : vector<32x128xf32>
    %cst_28 = arith.constant 1.000000e+00 : f32
    %58 = vector.broadcast %cst_28 : f32 to vector<32x128xf32>
    %59 = arith.divf %58, %57 : vector<32x128xf32>
    %cst_29 = arith.constant 1.06140542 : f32
    %60 = vector.broadcast %cst_29 : f32 to vector<32x128xf32>
    %61 = arith.mulf %59, %60 : vector<32x128xf32>
    %cst_30 = arith.constant -1.45315206 : f32
    %62 = vector.broadcast %cst_30 : f32 to vector<32x128xf32>
    %63 = arith.addf %62, %61 : vector<32x128xf32>
    %64 = arith.mulf %59, %63 : vector<32x128xf32>
    %cst_31 = arith.constant 1.42141378 : f32
    %65 = vector.broadcast %cst_31 : f32 to vector<32x128xf32>
    %66 = arith.addf %65, %64 : vector<32x128xf32>
    %67 = arith.mulf %59, %66 : vector<32x128xf32>
    %cst_32 = arith.constant -0.284496725 : f32
    %68 = vector.broadcast %cst_32 : f32 to vector<32x128xf32>
    %69 = arith.addf %68, %67 : vector<32x128xf32>
    %70 = arith.mulf %59, %69 : vector<32x128xf32>
    %cst_33 = arith.constant 0.254829586 : f32
    %71 = vector.broadcast %cst_33 : f32 to vector<32x128xf32>
    %72 = arith.addf %71, %70 : vector<32x128xf32>
    %73 = arith.mulf %59, %72 : vector<32x128xf32>
    %74 = arith.mulf %53, %53 : vector<32x128xf32>
    %cst_34 = arith.constant 0.000000e+00 : f32
    %75 = vector.broadcast %cst_34 : f32 to vector<32x128xf32>
    %76 = arith.subf %75, %74 : vector<32x128xf32>
    %77 = math.exp %76 : vector<32x128xf32>
    %78 = arith.mulf %73, %77 : vector<32x128xf32>
    %cst_35 = arith.constant 1.000000e+00 : f32
    %79 = vector.broadcast %cst_35 : f32 to vector<32x128xf32>
    %80 = arith.subf %79, %78 : vector<32x128xf32>
    %cst_36 = arith.constant 0.000000e+00 : f32
    %81 = vector.broadcast %cst_36 : f32 to vector<32x128xf32>
    %82 = arith.cmpf oge, %50, %81 : vector<32x128xf32>
    %cst_37 = arith.constant 0.000000e+00 : f32
    %83 = vector.broadcast %cst_37 : f32 to vector<32x128xf32>
    %84 = arith.subf %83, %80 : vector<32x128xf32>
    %85 = arith.select %82, %80, %84 : vector<32x128xi1>, vector<32x128xf32>
    %cst_38 = arith.constant 5.000000e-01 : f32
    %86 = vector.broadcast %cst_38 : f32 to vector<32x128xf32>
    %87 = arith.mulf %86, %50 : vector<32x128xf32>
    %cst_39 = arith.constant 1.000000e+00 : f32
    %88 = vector.broadcast %cst_39 : f32 to vector<32x128xf32>
    %89 = arith.addf %88, %85 : vector<32x128xf32>
    %90 = arith.mulf %87, %89 : vector<32x128xf32>
    %c0_40 = arith.constant 0 : index
    %c0_41 = arith.constant 0 : index
    %91 = vector.load %arg6[%c0_40, %c0_41] : memref<1x32xf32, #tpu.memory_space<vmem>>, vector<1x32xf32>
    %cst_42 = arith.constant dense<0.000000e+00> : vector<1x128xf32>
    %92 = tpu.matmul %91, %90, %cst_42 {dimension_numbers = #tpu.dot_dimension_numbers<[1], [0], [0], [1], [0, 0, 1, 1], [], []>} : vector<1x32xf32>, vector<32x128xf32>, vector<1x128xf32> -> vector<1x128xf32>
    %c0_43 = arith.constant 0 : index
    %c0_44 = arith.constant 0 : index
    %93 = vector.load %arg7[%c0_43, %c0_44] : memref<1x1xf32, #tpu.memory_space<vmem>>, vector<1x1xf32>
    %94 = vector.broadcast %93 : vector<1x1xf32> to vector<1x128xf32>
    %95 = arith.addf %92, %94 : vector<1x128xf32>
    %c0_45 = arith.constant 0 : index
    %c0_46 = arith.constant 0 : index
    %96 = vector.load %arg8[%c0_45, %c0_46] : memref<1x128xf32, #tpu.memory_space<vmem>>, vector<1x128xf32>
    tpu.vector_store %arg8[%c0_45, %c0_46], %95 {strides = array<i32>} : memref<1x128xf32, #tpu.memory_space<vmem>>, vector<1x128xf32>,
    return
  }
  func.func @transform_0(%arg0: i32) -> (i32, i32) {
    %c0_i32 = arith.constant 0 : i32
    %c0_i32_0 = arith.constant 0 : i32
    return %c0_i32, %arg0 : i32, i32
  }
  func.func @transform_1(%arg0: i32) -> (i32, i32) {
    %c0_i32 = arith.constant 0 : i32
    %c0_i32_0 = arith.constant 0 : i32
    %c0_i32_1 = arith.constant 0 : i32
    return %c0_i32, %c0_i32_0 : i32, i32
  }
  func.func @transform_2(%arg0: i32) -> (i32, i32) {
    %c0_i32 = arith.constant 0 : i32
    %c0_i32_0 = arith.constant 0 : i32
    %c0_i32_1 = arith.constant 0 : i32
    return %c0_i32, %c0_i32_0 : i32, i32
  }
  func.func @transform_3(%arg0: i32) -> (i32, i32) {
    %c0_i32 = arith.constant 0 : i32
    %c0_i32_0 = arith.constant 0 : i32
    %c0_i32_1 = arith.constant 0 : i32
    return %c0_i32, %c0_i32_0 : i32, i32
  }
  func.func @transform_4(%arg0: i32) -> (i32, i32) {
    %c0_i32 = arith.constant 0 : i32
    %c0_i32_0 = arith.constant 0 : i32
    %c0_i32_1 = arith.constant 0 : i32
    return %c0_i32, %c0_i32_0 : i32, i32
  }
  func.func @transform_5(%arg0: i32) -> (i32, i32) {
    %c0_i32 = arith.constant 0 : i32
    %c0_i32_0 = arith.constant 0 : i32
    %c0_i32_1 = arith.constant 0 : i32
    return %c0_i32, %c0_i32_0 : i32, i32
  }
  func.func @transform_6(%arg0: i32) -> (i32, i32) {
    %c0_i32 = arith.constant 0 : i32
    %c0_i32_0 = arith.constant 0 : i32
    %c0_i32_1 = arith.constant 0 : i32
    return %c0_i32, %c0_i32_0 : i32, i32
  }
  func.func @transform_7(%arg0: i32) -> (i32, i32) {
    %c0_i32 = arith.constant 0 : i32
    %c0_i32_0 = arith.constant 0 : i32
    return %c0_i32, %arg0 : i32, i32
  }
}

</mosaic_0001>

<llo_original>
// kernel: tpu_custom_call.1
$region0: #{tpu_custom_call.1}
  #allocation0 [shape = 'u32[]', space=smem, size = 0x4, offset = 0x4, fixed_abs, tag = 'smem constant byte address 0x4 - core index']
  #allocation1 [shape = 'u32[72,128]{1,0:T(1,128)}', space=vmem, size = 0x9000, scoped, tag = 'internal scratch']
  #allocation2 [shape = 'f32[1,1]{1,0:T(1,128)S(1)}', space=vmem, size = 0x200, scoped, tag = 'scoped memory for tpu_custom_call.1']
  %s0 = inlined_call_operand.vmem [shape: f32[1,128], index: 0, kind: input, shape index: {}]
  %s1 = inlined_call_operand.vmem [shape: f32[32,1], index: 1, kind: input, shape index: {}]
  %s2 = inlined_call_operand.vmem [shape: f32[32,1], index: 2, kind: input, shape index: {}]
  %s3 = inlined_call_operand.vmem [shape: f32[32,32], index: 3, kind: input, shape index: {}]
  %s4 = inlined_call_operand.vmem [shape: f32[32,1], index: 4, kind: input, shape index: {}]
  %s5 = inlined_call_operand.vmem [shape: f32[1,32], index: 5, kind: input, shape index: {}]
  %s6 = inlined_call_operand.<no memory space> [shape: f32[1,1], index: 6, kind: input, shape index: {}]
  %s7 = inlined_call_operand.hbm [shape: f32[1,128], index: 7, kind: output, shape index: {}]
  %s8 = sld [smem:[#allocation0]]
  $region38: #{tpu_custom_call.1} parent=0
    _
  %s10 = ssub.s32 1, %s8
  %s11 = scalar_select 0, %s10, %s8
  %v12 = vstv %s6
  %13 = vst [vmem:[#allocation2] sm:$0x1] %v12
  $region1: #{tpu_custom_call.1} parent=0
    #allocation3 [shape = 'u8[512]{0}', space=vmem, size = 0x400, scoped, tag = 'output window, operand 0, single buffered']
    #allocation4 [shape = 's32[1]{0}', space=sflag, size = 0x4, scoped, tag = 'scoped memory for tpu_custom_call.1']
    %14 = vsyncpa [#allocation4], 0
    // Predicated region
    $region2: #{tpu_custom_call.1} parent=1 // pred_check
      _
    $region3: #{tpu_custom_call.1} parent=1 // pred_check_branch
      %16 = sbr.rel (0) target = $region5
    $region4: #{tpu_custom_call.1} parent=1 // pred_region
      _
    $region5: #{tpu_custom_call.1} parent=1 // pred_fallthru
      _
    // Predicated region
    $region6: #{tpu_custom_call.1} parent=1 // pred_check
      _
    $region7: #{tpu_custom_call.1} parent=1 // pred_check_branch
      %18 = sbr.rel (0) target = $region9
    $region8: #{tpu_custom_call.1} parent=1 // pred_region
      _
    $region9: #{tpu_custom_call.1} parent=1 // pred_fallthru
      _
    // Predicated region
    $region10: #{tpu_custom_call.1} parent=1 // pred_check
      _
    $region11: #{tpu_custom_call.1} parent=1 // pred_check_branch
      %20 = sbr.rel (0) target = $region13
    $region12: #{tpu_custom_call.1} parent=1 // pred_region
      _
    $region13: #{tpu_custom_call.1} parent=1 // pred_fallthru
      _
    // Predicated region
    $region14: #{tpu_custom_call.1} parent=1 // pred_check
      _
    $region15: #{tpu_custom_call.1} parent=1 // pred_check_branch
      %22 = sbr.rel (0) target = $region17
    $region16: #{tpu_custom_call.1} parent=1 // pred_region
      _
    $region17: #{tpu_custom_call.1} parent=1 // pred_fallthru
      _
    // Predicated region
    $region18: #{tpu_custom_call.1} parent=1 // pred_check
      _
    $region19: #{tpu_custom_call.1} parent=1 // pred_check_branch
      %24 = sbr.rel (0) target = $region21
    $region20: #{tpu_custom_call.1} parent=1 // pred_region
      _
    $region21: #{tpu_custom_call.1} parent=1 // pred_fallthru
      _
    // Predicated region
    $region22: #{tpu_custom_call.1} parent=1 // pred_check
      _
    $region23: #{tpu_custom_call.1} parent=1 // pred_check_branch
      %26 = sbr.rel (0) target = $region25
    $region24: #{tpu_custom_call.1} parent=1 // pred_region
      _
    $region25: #{tpu_custom_call.1} parent=1 // pred_fallthru
      _
    // Predicated region
    $region26: #{tpu_custom_call.1} parent=1 // pred_check
      _
    $region27: #{tpu_custom_call.1} parent=1 // pred_check_branch
      %28 = sbr.rel (0) target = $region29
    $region28: #{tpu_custom_call.1} parent=1 // pred_region
      _
    $region29: #{tpu_custom_call.1} parent=1 // pred_fallthru
      _
    %v29 = vld [vmem:[%s0] sm:$0x1]
    %v30 = vld [vmem:[%s1] sm:$0xff]
    %v31 = vld [vmem:[%s1 + $0x8] sm:$0xff]
    %v32 = vld [vmem:[%s1 + $0x10] sm:$0xff]
    %v33 = vld [vmem:[%s1 + $0x18] sm:$0xff]
    %v34 = vld [vmem:[%s2] sm:$0xff]
    %v35 = vld [vmem:[%s2 + $0x8] sm:$0xff]
    %v36 = vld [vmem:[%s2 + $0x10] sm:$0xff]
    %v37 = vld [vmem:[%s2 + $0x18] sm:$0xff]
    %39 = vset.pattern.permute.xlu0 0
    %40 = vperm.xlu0 %39, %v34
    %v41 = vpop.permute.xlu0 %40
    %44 = vset.pattern.permute.xlu0 0
    %45 = vperm.xlu0 %44, %v35
    %v46 = vpop.permute.xlu0 %45
    %49 = vset.pattern.permute.xlu0 0
    %50 = vperm.xlu0 %49, %v36
    %v51 = vpop.permute.xlu0 %50
    %54 = vset.pattern.permute.xlu0 0
    %55 = vperm.xlu0 %54, %v37
    %v56 = vpop.permute.xlu0 %55
    %vm58 = vcmask 7168
    %v60 = vsel %vm58, %v30, 0
    %v63 = vsel %vm58, %v31, 0
    %v66 = vsel %vm58, %v32, 0
    %v69 = vsel %vm58, %v33, 0
    %vm71 = vcmask 1040384
    %v73 = vsel %vm71, %v29, 0
    %75 = vmatpush.msra.mxu0 0.0
    %76 = vmatpush.msra.mxu0 0.0
    %77 = vmatpush.msra.mxu0 0.0
    %78 = vmatpush.msra.mxu0 0.0
    %79 = vmatpush.msra.mxu0 0.0
    %80 = vmatpush.msra.mxu0 0.0
    %81 = vmatpush.msra.mxu0 0.0
    %82 = vmatpush.msra.mxu0 0.0
    %83 = vmatpush.msra.mxu0 0.0
    %84 = vmatpush.msra.mxu0 0.0
    %85 = vmatpush.msra.mxu0 0.0
    %86 = vmatpush.msra.mxu0 0.0
    %87 = vmatpush.msra.mxu0 0.0
    %88 = vmatpush.msra.mxu0 0.0
    %89 = vmatpush.msra.mxu0 0.0
    %90 = vmatpush.msra.mxu0 %v73
    %91 = vmatmul.f32.gmra.mxu0 %v60
    %v92 = vpop.f32.mrf.mxu0
    %v93 = vadd.f32 %v41, %v92
    %94 = vmatmul.f32.gmra.mxu0 %v63
    %v95 = vpop.f32.mrf.mxu0
    %v96 = vadd.f32 %v46, %v95
    %97 = vmatmul.f32.gmra.mxu0 %v66
    %v98 = vpop.f32.mrf.mxu0
    %v99 = vadd.f32 %v51, %v98
    %100 = vmatmul.f32.gmra.mxu0 %v69
    %v101 = vpop.f32.mrf.mxu0
    %v102 = vadd.f32 %v56, %v101
    %103 = vdwg.mxu0
    %v104 = vand.u32 2147483647, %v93
    %v105 = vand.u32 2147483647, %v96
    %v106 = vand.u32 2147483647, %v99
    %v107 = vand.u32 2147483647, %v102
    %v108 = vmul.f32 %v104, 0.70710677
    %v109 = vmul.f32 %v105, 0.70710677
    %v110 = vmul.f32 %v106, 0.70710677
    %v111 = vmul.f32 %v107, 0.70710677
    %v112 = vmul.f32 %v108, 0.3275911
    %v113 = vmul.f32 %v109, 0.3275911
    %v114 = vmul.f32 %v110, 0.3275911
    %v115 = vmul.f32 %v111, 0.3275911
    %v116 = vadd.f32 %v112, 1.0
    %v117 = vadd.f32 %v113, 1.0
    %v118 = vadd.f32 %v114, 1.0
    %v119 = vadd.f32 %v115, 1.0
    %v120 = vrcp.pop %v116
    %v121 = vmul.f32 %v116, %v120
    %v122 = vsub.f32 1.0, %v121
    %v123 = vmul.f32 %v120, %v122
    %v124 = vadd.f32 %v120, %v123
    %vm125 = vweird.f32 %v116
    %vm126 = vweird.f32 %v120
    %vm127 = vmor %vm125, %vm126
    %v128 = vsel %vm127, %v120, %v124
    %v129 = vand.u32 2147483647, %v116
    %vm130 = vcmp.eq.f32.partialorder %v129, 8.507059e+37
    %v131 = vand.u32 %v116, 2147483648
    %v132 = vor.u32 1.1754944e-38, %v131
    %v133 = vsel %vm130, %v132, %v128
    %v134 = vmul.f32 1.0, %v133
    %v135 = vrcp.pop %v117
    %v136 = vmul.f32 %v117, %v135
    %v137 = vsub.f32 1.0, %v136
    %v138 = vmul.f32 %v135, %v137
    %v139 = vadd.f32 %v135, %v138
    %vm140 = vweird.f32 %v117
    %vm141 = vweird.f32 %v135
    %vm142 = vmor %vm140, %vm141
    %v143 = vsel %vm142, %v135, %v139
    %v144 = vand.u32 2147483647, %v117
    %vm145 = vcmp.eq.f32.partialorder %v144, 8.507059e+37
    %v146 = vand.u32 %v117, 2147483648
    %v147 = vor.u32 1.1754944e-38, %v146
    %v148 = vsel %vm145, %v147, %v143
    %v149 = vmul.f32 1.0, %v148
    %v150 = vrcp.pop %v118
    %v151 = vmul.f32 %v118, %v150
    %v152 = vsub.f32 1.0, %v151
    %v153 = vmul.f32 %v150, %v152
    %v154 = vadd.f32 %v150, %v153
    %vm155 = vweird.f32 %v118
    %vm156 = vweird.f32 %v150
    %vm157 = vmor %vm155, %vm156
    %v158 = vsel %vm157, %v150, %v154
    %v159 = vand.u32 2147483647, %v118
    %vm160 = vcmp.eq.f32.partialorder %v159, 8.507059e+37
    %v161 = vand.u32 %v118, 2147483648
    %v162 = vor.u32 1.1754944e-38, %v161
    %v163 = vsel %vm160, %v162, %v158
    %v164 = vmul.f32 1.0, %v163
    %v165 = vrcp.pop %v119
    %v166 = vmul.f32 %v119, %v165
    %v167 = vsub.f32 1.0, %v166
    %v168 = vmul.f32 %v165, %v167
    %v169 = vadd.f32 %v165, %v168
    %vm170 = vweird.f32 %v119
    %vm171 = vweird.f32 %v165
    %vm172 = vmor %vm170, %vm171
    %v173 = vsel %vm172, %v165, %v169
    %v174 = vand.u32 2147483647, %v119
    %vm175 = vcmp.eq.f32.partialorder %v174, 8.507059e+37
    %v176 = vand.u32 %v119, 2147483648
    %v177 = vor.u32 1.1754944e-38, %v176
    %v178 = vsel %vm175, %v177, %v173
    %v179 = vmul.f32 1.0, %v178
    %v180 = vmul.f32 %v134, 1.0614054
    %v181 = vmul.f32 %v149, 1.0614054
    %v182 = vmul.f32 %v164, 1.0614054
    %v183 = vmul.f32 %v179, 1.0614054
    %v184 = vadd.f32 %v180, -1.4531521
    %v185 = vadd.f32 %v181, -1.4531521
    %v186 = vadd.f32 %v182, -1.4531521
    %v187 = vadd.f32 %v183, -1.4531521
    %v188 = vmul.f32 %v134, %v184
    %v189 = vmul.f32 %v149, %v185
    %v190 = vmul.f32 %v164, %v186
    %v191 = vmul.f32 %v179, %v187
    %v192 = vadd.f32 %v188, 1.4214138
    %v193 = vadd.f32 %v189, 1.4214138
    %v194 = vadd.f32 %v190, 1.4214138
    %v195 = vadd.f32 %v191, 1.4214138
    %v196 = vmul.f32 %v134, %v192
    %v197 = vmul.f32 %v149, %v193
    %v198 = vmul.f32 %v164, %v194
    %v199 = vmul.f32 %v179, %v195
    %v200 = vadd.f32 %v196, -0.28449672
    %v201 = vadd.f32 %v197, -0.28449672
    %v202 = vadd.f32 %v198, -0.28449672
    %v203 = vadd.f32 %v199, -0.28449672
    %v204 = vmul.f32 %v134, %v200
    %v205 = vmul.f32 %v149, %v201
    %v206 = vmul.f32 %v164, %v202
    %v207 = vmul.f32 %v179, %v203
    %v208 = vadd.f32 %v204, 0.2548296
    %v209 = vadd.f32 %v205, 0.2548296
    %v210 = vadd.f32 %v206, 0.2548296
    %v211 = vadd.f32 %v207, 0.2548296
    %v212 = vmul.f32 %v134, %v208
    %v213 = vmul.f32 %v149, %v209
    %v214 = vmul.f32 %v164, %v210
    %v215 = vmul.f32 %v179, %v211
    %v216 = vmul.f32 %v108, %v108
    %v217 = vmul.f32 %v109, %v109
    %v218 = vmul.f32 %v110, %v110
    %v219 = vmul.f32 %v111, %v111
    %v220 = vsub.f32 0.0, %v216
    %v221 = vsub.f32 0.0, %v217
    %v222 = vsub.f32 0.0, %v218
    %v223 = vsub.f32 0.0, %v219
    %v224 = vmul.f32 %v220, 1.442695
    %v225 = vpow.pop %v224
    %v226 = vmul.f32 %v221, 1.442695
    %v227 = vpow.pop %v226
    %v228 = vmul.f32 %v222, 1.442695
    %v229 = vpow.pop %v228
    %v230 = vmul.f32 %v223, 1.442695
    %v231 = vpow.pop %v230
    %v232 = vmul.f32 %v212, %v225
    %v233 = vmul.f32 %v213, %v227
    %v234 = vmul.f32 %v214, %v229
    %v235 = vmul.f32 %v215, %v231
    %v236 = vsub.f32 1.0, %v232
    %v237 = vsub.f32 1.0, %v233
    %v238 = vsub.f32 1.0, %v234
    %v239 = vsub.f32 1.0, %v235
    %vm240 = vcmp.ge.f32.partialorder %v93, 0.0
    %vm241 = vcmp.ge.f32.partialorder %v96, 0.0
    %vm242 = vcmp.ge.f32.partialorder %v99, 0.0
    %vm243 = vcmp.ge.f32.partialorder %v102, 0.0
    %v244 = vsub.f32 0.0, %v236
    %v245 = vsub.f32 0.0, %v237
    %v246 = vsub.f32 0.0, %v238
    %v247 = vsub.f32 0.0, %v239
    %v248 = vsel %vm240, %v236, %v244
    %v249 = vsel %vm241, %v237, %v245
    %v250 = vsel %vm242, %v238, %v246
    %v251 = vsel %vm243, %v239, %v247
    %v252 = vmul.f32 %v93, 0.5
    %v253 = vmul.f32 %v96, 0.5
    %v254 = vmul.f32 %v99, 0.5
    %v255 = vmul.f32 %v102, 0.5
    %v256 = vadd.f32 %v248, 1.0
    %v257 = vadd.f32 %v249, 1.0
    %v258 = vadd.f32 %v250, 1.0
    %v259 = vadd.f32 %v251, 1.0
    %v260 = vmul.f32 %v252, %v256
    %v261 = vmul.f32 %v253, %v257
    %v262 = vmul.f32 %v254, %v258
    %v263 = vmul.f32 %v255, %v259
    %v264 = vld [vmem:[%s3] sm:$0xff]
    %v265 = vld [vmem:[%s3 + $0x8] sm:$0xff]
    %v266 = vld [vmem:[%s3 + $0x10] sm:$0xff]
    %v267 = vld [vmem:[%s3 + $0x18] sm:$0xff]
    %v268 = vld [vmem:[%s4] sm:$0xff]
    %v269 = vld [vmem:[%s4 + $0x8] sm:$0xff]
    %v270 = vld [vmem:[%s4 + $0x10] sm:$0xff]
    %v271 = vld [vmem:[%s4 + $0x18] sm:$0xff]
    %273 = vset.pattern.permute.xlu0 0
    %274 = vperm.xlu0 %273, %v268
    %v275 = vpop.permute.xlu0 %274
    %278 = vset.pattern.permute.xlu0 0
    %279 = vperm.xlu0 %278, %v269
    %v280 = vpop.permute.xlu0 %279
    %283 = vset.pattern.permute.xlu0 0
    %284 = vperm.xlu0 %283, %v270
    %v285 = vpop.permute.xlu0 %284
    %288 = vset.pattern.permute.xlu0 0
    %289 = vperm.xlu0 %288, %v271
    %v290 = vpop.permute.xlu0 %289
    %vm292 = vcmask 261120
    %v294 = vsel %vm292, %v264, 0
    %v297 = vsel %vm292, %v265, 0
    %v300 = vsel %vm292, %v266, 0
    %v303 = vsel %vm292, %v267, 0
    %305 = vmatpush.msra.mxu0 0.0
    %306 = vmatpush.msra.mxu0 0.0
    %307 = vmatpush.msra.mxu0 0.0
    %308 = vmatpush.msra.mxu0 0.0
    %309 = vmatpush.msra.mxu0 0.0
    %310 = vmatpush.msra.mxu0 0.0
    %311 = vmatpush.msra.mxu0 0.0
    %312 = vmatpush.msra.mxu0 0.0
    %313 = vmatpush.msra.mxu0 0.0
    %314 = vmatpush.msra.mxu0 0.0
    %315 = vmatpush.msra.mxu0 0.0
    %316 = vmatpush.msra.mxu0 0.0
    %317 = vmatpush.msra.mxu0 %v263
    %318 = vmatpush.msra.mxu0 %v262
    %319 = vmatpush.msra.mxu0 %v261
    %320 = vmatpush.msra.mxu0 %v260
    %321 = vmatmul.f32.gmra.mxu0 %v294
    %v322 = vpop.f32.mrf.mxu0
    %v323 = vadd.f32 %v275, %v322
    %324 = vmatmul.f32.gmra.mxu0 %v297
    %v325 = vpop.f32.mrf.mxu0
    %v326 = vadd.f32 %v280, %v325
    %327 = vmatmul.f32.gmra.mxu0 %v300
    %v328 = vpop.f32.mrf.mxu0
    %v329 = vadd.f32 %v285, %v328
    %330 = vmatmul.f32.gmra.mxu0 %v303
    %v331 = vpop.f32.mrf.mxu0
    %v332 = vadd.f32 %v290, %v331
    %333 = vdwg.mxu0
    %v334 = vand.u32 2147483647, %v323
    %v335 = vand.u32 2147483647, %v326
    %v336 = vand.u32 2147483647, %v329
    %v337 = vand.u32 2147483647, %v332
    %v338 = vmul.f32 %v334, 0.70710677
    %v339 = vmul.f32 %v335, 0.70710677
    %v340 = vmul.f32 %v336, 0.70710677
    %v341 = vmul.f32 %v337, 0.70710677
    %v342 = vmul.f32 %v338, 0.3275911
    %v343 = vmul.f32 %v339, 0.3275911
    %v344 = vmul.f32 %v340, 0.3275911
    %v345 = vmul.f32 %v341, 0.3275911
    %v346 = vadd.f32 %v342, 1.0
    %v347 = vadd.f32 %v343, 1.0
    %v348 = vadd.f32 %v344, 1.0
    %v349 = vadd.f32 %v345, 1.0
    %v350 = vrcp.pop %v346
    %v351 = vmul.f32 %v346, %v350
    %v352 = vsub.f32 1.0, %v351
    %v353 = vmul.f32 %v350, %v352
    %v354 = vadd.f32 %v350, %v353
    %vm355 = vweird.f32 %v346
    %vm356 = vweird.f32 %v350
    %vm357 = vmor %vm355, %vm356
    %v358 = vsel %vm357, %v350, %v354
    %v359 = vand.u32 2147483647, %v346
    %vm360 = vcmp.eq.f32.partialorder %v359, 8.507059e+37
    %v361 = vand.u32 %v346, 2147483648
    %v362 = vor.u32 1.1754944e-38, %v361
    %v363 = vsel %vm360, %v362, %v358
    %v364 = vmul.f32 1.0, %v363
    %v365 = vrcp.pop %v347
    %v366 = vmul.f32 %v347, %v365
    %v367 = vsub.f32 1.0, %v366
    %v368 = vmul.f32 %v365, %v367
    %v369 = vadd.f32 %v365, %v368
    %vm370 = vweird.f32 %v347
    %vm371 = vweird.f32 %v365
    %vm372 = vmor %vm370, %vm371
    %v373 = vsel %vm372, %v365, %v369
    %v374 = vand.u32 2147483647, %v347
    %vm375 = vcmp.eq.f32.partialorder %v374, 8.507059e+37
    %v376 = vand.u32 %v347, 2147483648
    %v377 = vor.u32 1.1754944e-38, %v376
    %v378 = vsel %vm375, %v377, %v373
    %v379 = vmul.f32 1.0, %v378
    %v380 = vrcp.pop %v348
    %v381 = vmul.f32 %v348, %v380
    %v382 = vsub.f32 1.0, %v381
    %v383 = vmul.f32 %v380, %v382
    %v384 = vadd.f32 %v380, %v383
    %vm385 = vweird.f32 %v348
    %vm386 = vweird.f32 %v380
    %vm387 = vmor %vm385, %vm386
    %v388 = vsel %vm387, %v380, %v384
    %v389 = vand.u32 2147483647, %v348
    %vm390 = vcmp.eq.f32.partialorder %v389, 8.507059e+37
    %v391 = vand.u32 %v348, 2147483648
    %v392 = vor.u32 1.1754944e-38, %v391
    %v393 = vsel %vm390, %v392, %v388
    %v394 = vmul.f32 1.0, %v393
    %v395 = vrcp.pop %v349
    %v396 = vmul.f32 %v349, %v395
    %v397 = vsub.f32 1.0, %v396
    %v398 = vmul.f32 %v395, %v397
    %v399 = vadd.f32 %v395, %v398
    %vm400 = vweird.f32 %v349
    %vm401 = vweird.f32 %v395
    %vm402 = vmor %vm400, %vm401
    %v403 = vsel %vm402, %v395, %v399
    %v404 = vand.u32 2147483647, %v349
    %vm405 = vcmp.eq.f32.partialorder %v404, 8.507059e+37
    %v406 = vand.u32 %v349, 2147483648
    %v407 = vor.u32 1.1754944e-38, %v406
    %v408 = vsel %vm405, %v407, %v403
    %v409 = vmul.f32 1.0, %v408
    %v410 = vmul.f32 %v364, 1.0614054
    %v411 = vmul.f32 %v379, 1.0614054
    %v412 = vmul.f32 %v394, 1.0614054
    %v413 = vmul.f32 %v409, 1.0614054
    %v414 = vadd.f32 %v410, -1.4531521
    %v415 = vadd.f32 %v411, -1.4531521
    %v416 = vadd.f32 %v412, -1.4531521
    %v417 = vadd.f32 %v413, -1.4531521
    %v418 = vmul.f32 %v364, %v414
    %v419 = vmul.f32 %v379, %v415
    %v420 = vmul.f32 %v394, %v416
    %v421 = vmul.f32 %v409, %v417
    %v422 = vadd.f32 %v418, 1.4214138
    %v423 = vadd.f32 %v419, 1.4214138
    %v424 = vadd.f32 %v420, 1.4214138
    %v425 = vadd.f32 %v421, 1.4214138
    %v426 = vmul.f32 %v364, %v422
    %v427 = vmul.f32 %v379, %v423
    %v428 = vmul.f32 %v394, %v424
    %v429 = vmul.f32 %v409, %v425
    %v430 = vadd.f32 %v426, -0.28449672
    %v431 = vadd.f32 %v427, -0.28449672
    %v432 = vadd.f32 %v428, -0.28449672
    %v433 = vadd.f32 %v429, -0.28449672
    %v434 = vmul.f32 %v364, %v430
    %v435 = vmul.f32 %v379, %v431
    %v436 = vmul.f32 %v394, %v432
    %v437 = vmul.f32 %v409, %v433
    %v438 = vadd.f32 %v434, 0.2548296
    %v439 = vadd.f32 %v435, 0.2548296
    %v440 = vadd.f32 %v436, 0.2548296
    %v441 = vadd.f32 %v437, 0.2548296
    %v442 = vmul.f32 %v364, %v438
    %v443 = vmul.f32 %v379, %v439
    %v444 = vmul.f32 %v394, %v440
    %v445 = vmul.f32 %v409, %v441
    %v446 = vmul.f32 %v338, %v338
    %v447 = vmul.f32 %v339, %v339
    %v448 = vmul.f32 %v340, %v340
    %v449 = vmul.f32 %v341, %v341
    %v450 = vsub.f32 0.0, %v446
    %v451 = vsub.f32 0.0, %v447
    %v452 = vsub.f32 0.0, %v448
    %v453 = vsub.f32 0.0, %v449
    %v454 = vmul.f32 %v450, 1.442695
    %v455 = vpow.pop %v454
    %v456 = vmul.f32 %v451, 1.442695
    %v457 = vpow.pop %v456
    %v458 = vmul.f32 %v452, 1.442695
    %v459 = vpow.pop %v458
    %v460 = vmul.f32 %v453, 1.442695
    %v461 = vpow.pop %v460
    %v462 = vmul.f32 %v442, %v455
    %v463 = vmul.f32 %v443, %v457
    %v464 = vmul.f32 %v444, %v459
    %v465 = vmul.f32 %v445, %v461
    %v466 = vsub.f32 1.0, %v462
    %v467 = vsub.f32 1.0, %v463
    %v468 = vsub.f32 1.0, %v464
    %v469 = vsub.f32 1.0, %v465
    %vm470 = vcmp.ge.f32.partialorder %v323, 0.0
    %vm471 = vcmp.ge.f32.partialorder %v326, 0.0
    %vm472 = vcmp.ge.f32.partialorder %v329, 0.0
    %vm473 = vcmp.ge.f32.partialorder %v332, 0.0
    %v474 = vsub.f32 0.0, %v466
    %v475 = vsub.f32 0.0, %v467
    %v476 = vsub.f32 0.0, %v468
    %v477 = vsub.f32 0.0, %v469
    %v478 = vsel %vm470, %v466, %v474
    %v479 = vsel %vm471, %v467, %v475
    %v480 = vsel %vm472, %v468, %v476
    %v481 = vsel %vm473, %v469, %v477
    %v482 = vmul.f32 %v323, 0.5
    %v483 = vmul.f32 %v326, 0.5
    %v484 = vmul.f32 %v329, 0.5
    %v485 = vmul.f32 %v332, 0.5
    %v486 = vadd.f32 %v478, 1.0
    %v487 = vadd.f32 %v479, 1.0
    %v488 = vadd.f32 %v480, 1.0
    %v489 = vadd.f32 %v481, 1.0
    %v490 = vmul.f32 %v482, %v486
    %v491 = vmul.f32 %v483, %v487
    %v492 = vmul.f32 %v484, %v488
    %v493 = vmul.f32 %v485, %v489
    %v494 = vld [vmem:[%s5] sm:$0x1]
    %v495 = vld [vmem:[#allocation2] sm:$0x1]
    %497 = vset.pattern.permute.xlu0 0
    %498 = vperm.xlu0 %497, %v495
    %v499 = vpop.permute.xlu0 %498
    %v501 = vperm.slane %v499, 0
    %v503 = vsel %vm292, %v494, 0
    %505 = vmatpush.msra.mxu0 0.0
    %506 = vmatpush.msra.mxu0 0.0
    %507 = vmatpush.msra.mxu0 0.0
    %508 = vmatpush.msra.mxu0 0.0
    %509 = vmatpush.msra.mxu0 0.0
    %510 = vmatpush.msra.mxu0 0.0
    %511 = vmatpush.msra.mxu0 0.0
    %512 = vmatpush.msra.mxu0 0.0
    %513 = vmatpush.msra.mxu0 0.0
    %514 = vmatpush.msra.mxu0 0.0
    %515 = vmatpush.msra.mxu0 0.0
    %516 = vmatpush.msra.mxu0 0.0
    %517 = vmatpush.msra.mxu0 %v493
    %518 = vmatpush.msra.mxu0 %v492
    %519 = vmatpush.msra.mxu0 %v491
    %520 = vmatpush.msra.mxu0 %v490
    %521 = vmatmul.f32.gmra.mxu0 %v503
    %v522 = vpop.f32.mrf.mxu0
    %v523 = vadd.f32 %v501, %v522
    %524 = vdwg.mxu0
    %525 = vst [vmem:[#allocation3] sm:$0x1] %v523
    // Predicated region
    $region30: #{tpu_custom_call.1} parent=1 // pred_check
      _
    $region31: #{tpu_custom_call.1} parent=1 // pred_check_branch
      %527 = sbr.rel (0) target = $region33
    $region32: #{tpu_custom_call.1} parent=1 // pred_region
      %529 = vsyncadd [#allocation4], 0
      %s531 = sshll.u32 [#allocation3], 4
      %s532 = int_to_ptr.vmem [resolvable:$true] %s531
      %s533 = sshll.u32 %s7, 4
      %s534 = int_to_ptr.hbm [resolvable:$true] %s533
      %536 = dma.vmem_to_hbm [thread:$0]  %s532, 16, %s534, [#allocation4]
    $region33: #{tpu_custom_call.1} parent=1 // pred_fallthru
      _
    // Predicated region
    $region34: #{tpu_custom_call.1} parent=1 // pred_check
      _
    $region35: #{tpu_custom_call.1} parent=1 // pred_check_branch
      %538 = sbr.rel (0) target = $region37
    $region36: #{tpu_custom_call.1} parent=1 // pred_region
      %540 = dma.done [#allocation4], 16
    $region37: #{tpu_custom_call.1} parent=1 // pred_fallthru
      _
    %541 = vsyncpa [#allocation4], 1

</llo_original>
